<compile_context>
chip_gen: v7x
topology: tpu7x:2x2x1
jax: 0.10.0
libtpu: 0.0.40
codegen_flags: <defaults>
</compile_context>

<pallas_src>
import functools

import jax
import jax.numpy as jnp
from jax.experimental import pallas as pl
from jax.experimental.pallas import tpu as pltpu


def _cdiv(a: int, b: int) -> int:
    return (a + b - 1) // b


def _round_up(x: int, m: int) -> int:
    return ((x + m - 1) // m) * m


def _choose_tile_p(num_persons: int, max_tile_p: int = 4096, min_steps: int = 2) -> int:
    """Persons-tile: multiple of 128, evenly covers the 128-rounded persons
    extent (no dead tiles), and keeps >= 2 grid steps when possible so both
    v7x TensorCores get work (harmless on v5e/v6e)."""
    p128 = _round_up(num_persons, 128)
    steps = max(min_steps, _cdiv(p128, max_tile_p))
    tp = _round_up(_cdiv(p128, steps), 128)
    return max(128, min(tp, p128))


def labeled_matching_kernel(f_ref, lut_t_ref, out_ref):
    # f_ref:     (N, feat_len)       -- full features block, resident every step
    # lut_t_ref: (feat_len, tile_p)  -- one tile of the PRE-TRANSPOSED table
    # out_ref:   (N, tile_p)         -- corresponding tile of the score matrix (f32)
    #
    # Canonical [N,K]x[K,tp] contraction -> MXU directly, no transpose work;
    # f32 accumulation is written straight to the lane-dense output tile.
    out_ref[...] = jnp.dot(
        f_ref[...], lut_t_ref[...], preferred_element_type=jnp.float32
    )


@functools.partial(jax.jit, static_argnames=("tile_p",))
def labeled_matching(features, pid_labels, lookup_table_t, *, tile_p=None):
    """scores[N, P] = features[N, F] @ lookup_table[P, F].T

    `lookup_table_t` is the table stored pre-transposed as [F, P] in the
    compute dtype (a fixed buffer: cast + transpose happen once at init).
    """
    del pid_labels  # only used by the training-time backward momentum update

    N, feat_len = features.shape
    feat_len2, num_persons = lookup_table_t.shape
    assert feat_len == feat_len2, (feat_len, feat_len2)

    tp = _choose_tile_p(num_persons) if tile_p is None else int(tile_p)
    assert tp % 128 == 0, "tile_p must be a multiple of the 128-lane width"

    grid = (_cdiv(num_persons, tp),)
    f = features.astype(lookup_table_t.dtype)  # tiny (N x F) cast

    itemsize = jnp.dtype(lookup_table_t.dtype).itemsize
    cost = pl.CostEstimate(
        flops=2 * N * feat_len * num_persons,
        transcendentals=0,
        bytes_accessed=(
            N * feat_len * itemsize          # features
            + feat_len * num_persons * itemsize  # lookup table stream
            + N * num_persons * 4                # f32 scores writeback
        ),
    )

    return pl.pallas_call(
        labeled_matching_kernel,
        out_shape=jax.ShapeDtypeStruct((N, num_persons), jnp.float32),
        grid_spec=pltpu.PrefetchScalarGridSpec(
            num_scalar_prefetch=0,
            grid=grid,
            in_specs=[
                # features: same (full) block every grid step -> stays resident
                pl.BlockSpec((N, feat_len), lambda j: (0, 0)),
                # pre-transposed table: lane-dense tile along num_persons
                pl.BlockSpec((feat_len, tp), lambda j: (0, j)),
            ],
            # Ragged tail (num_persons not a multiple of tp) is handled by
            # Pallas with a masked store on the last block only.
            out_specs=pl.BlockSpec((N, tp), lambda j: (0, j)),
        ),
        compiler_params=pltpu.CompilerParams(
            # Persons tiles are independent -> shard across TCs on v7x.
            dimension_semantics=("parallel",),
        ),
        cost_estimate=cost,
    )(f, lookup_table_t)


class LabeledMatchingLayer:
    """JAX/Pallas counterpart of the PyTorch LabeledMatchingLayer (forward only)."""

    def __init__(self, num_persons=5532, feat_len=256, key=None,
                 compute_dtype=jnp.bfloat16):
        self.num_persons = num_persons
        self.feat_len = feat_len
        # PyTorch registers a zeros buffer; we initialize deterministically with
        # small random values so the demo output is non-trivial.  Real weights
        # can be loaded via set_lookup_table().
        if key is None:
            key = jax.random.PRNGKey(0)
        table = 0.01 * jax.random.normal(
            key, (num_persons, feat_len), dtype=jnp.float32
        )
        self.set_lookup_table(table, compute_dtype=compute_dtype)
        # TODO(synk): backward-pass momentum update of lookup_table (in-place
        # buffer mutation keyed on pid_labels >= 0) is training-only and not
        # part of the forward kernel.

    def set_lookup_table(self, table, compute_dtype=jnp.bfloat16):
        """One-time cast + transpose of the fixed buffer.

        The kernel streams the table as [feat_len, num_persons] in
        compute_dtype, so there are no per-call astype / pad / transpose
        copies in HBM.  Use compute_dtype=jnp.float32 for exact f32 scores.
        """
        table = jnp.asarray(table, dtype=jnp.float32)
        assert table.shape == (self.num_persons, self.feat_len)
        self.lookup_table = table                       # reference layout, f32
        self._lookup_table_t = table.T.astype(compute_dtype)  # kernel layout

    def __call__(self, features, pid_labels):
        return labeled_matching(features, pid_labels, self._lookup_table_t)


def _check(scores, features, layer, atol=1e-4, rtol=1e-4):
    # Reference computed in the same precision as the kernel (compute_dtype
    # inputs, f32 accumulation).  Note: with the default bf16 compute_dtype the
    # forward deviates slightly from PyTorch's f32 matmul; use
    # compute_dtype=jnp.float32 if the OIM loss needs exact f32 scores.
    lut_t = layer._lookup_table_t
    f = features.astype(lut_t.dtype)
    ref = jnp.dot(f, lut_t, preferred_element_type=jnp.float32)
    assert scores.shape == (features.shape[0], layer.num_persons), scores.shape
    assert jnp.allclose(scores, ref, atol=atol, rtol=rtol), float(
        jnp.max(jnp.abs(scores - ref))
    )


if __name__ == "__main__":
    key = jax.random.PRNGKey(0)
    k_feat, k_lut, k_lab, k_feat2, k_lut2 = jax.random.split(key, 5)

    # Small demo; num_persons deliberately NOT a multiple of 128 so the ragged
    # (masked tail-store) path is exercised.
    N, feat_len, num_persons = 8, 32, 300
    features = jax.random.normal(k_feat, (N, feat_len), dtype=jnp.float32)
    pid_labels = jax.random.randint(k_lab, (N,), -1, num_persons, dtype=jnp.int32)

    layer = LabeledMatchingLayer(num_persons=num_persons, feat_len=feat_len, key=k_lut)
    scores = jax.block_until_ready(layer(features, pid_labels))
    _check(scores, features, layer)

    # Module-default shape (P=5532, F=256): tile_p=2816 -> 2 ragged grid steps.
    N2, F2, P2 = 64, 256, 5532
    features2 = jax.random.normal(k_feat2, (N2, F2), dtype=jnp.float32)
    pid_labels2 = jnp.zeros((N2,), dtype=jnp.int32)
    layer2 = LabeledMatchingLayer(num_persons=P2, feat_len=F2, key=k_lut2)
    scores2 = jax.block_until_ready(layer2(features2, pid_labels2))
    _check(scores2, features2, layer2)

    print("KERNEL_OK")
</pallas_src>

<mosaic_0001>
module attributes {stable_mosaic.version = 11 : i64} {
  func.func @labeled_matching_kernel(%arg0: i32, %arg1: memref<8x32xbf16, #tpu.memory_space<vmem>>, %arg2: memref<32x256xbf16, #tpu.memory_space<vmem>>, %arg3: memref<8x256xf32, #tpu.memory_space<vmem>>) attributes {dimension_semantics = [#tpu.dimension_semantics<parallel>], iteration_bounds = array<i64: 2>, scalar_prefetch = 0 : i64, scratch_operands = 0 : i64, tpu.core_type = #tpu.core_type<tc>, window_params = [{pipeline_mode = #tpu.pipeline_mode<synchronous>, transform_indices = @transform_0, window_bounds = array<i64: 8, 32>}, {transform_indices = @transform_1, window_bounds = array<i64: 32, 256>}, {transform_indices = @transform_2, window_bounds = array<i64: 8, 256>}]} {
    %c0 = arith.constant 0 : index
    %c0_0 = arith.constant 0 : index
    %0 = vector.load %arg1[%c0, %c0_0] : memref<8x32xbf16, #tpu.memory_space<vmem>>, vector<8x32xbf16>
    %c0_1 = arith.constant 0 : index
    %c0_2 = arith.constant 0 : index
    %1 = vector.load %arg2[%c0_1, %c0_2] : memref<32x256xbf16, #tpu.memory_space<vmem>>, vector<32x256xbf16>
    %cst = arith.constant dense<0.000000e+00> : vector<8x256xf32>
    %2 = tpu.matmul %0, %1, %cst {dimension_numbers = #tpu.dot_dimension_numbers<[1], [0], [0], [1], [0, 0, 1, 1], [], []>} : vector<8x32xbf16>, vector<32x256xbf16>, vector<8x256xf32> -> vector<8x256xf32>
    %c0_3 = arith.constant 0 : index
    %c0_4 = arith.constant 0 : index
    %3 = vector.load %arg3[%c0_3, %c0_4] : memref<8x256xf32, #tpu.memory_space<vmem>>, vector<8x256xf32>
    tpu.vector_store %arg3[%c0_3, %c0_4], %2 {strides = array<i32>} : memref<8x256xf32, #tpu.memory_space<vmem>>, vector<8x256xf32>,
    return
  }
  func.func @transform_0(%arg0: i32) -> (i32, i32) {
    %c0_i32 = arith.constant 0 : i32
    %c0_i32_0 = arith.constant 0 : i32
    %c0_i32_1 = arith.constant 0 : i32
    return %c0_i32, %c0_i32_0 : i32, i32
  }
  func.func @transform_1(%arg0: i32) -> (i32, i32) {
    %c0_i32 = arith.constant 0 : i32
    %c0_i32_0 = arith.constant 0 : i32
    return %c0_i32, %arg0 : i32, i32
  }
  func.func @transform_2(%arg0: i32) -> (i32, i32) {
    %c0_i32 = arith.constant 0 : i32
    %c0_i32_0 = arith.constant 0 : i32
    return %c0_i32, %arg0 : i32, i32
  }
}

</mosaic_0001>

<llo_original>
// kernel: labeled_matching.1
$region0: #{labeled_matching.1}
  #allocation0 [shape = 'u32[]', space=smem, size = 0x4, offset = 0x4, fixed_abs, tag = 'smem constant byte address 0x4 - core index']
  #allocation1 [shape = 'u32[144,128]{1,0:T(1,128)}', space=vmem, size = 0x12000, scoped, tag = 'internal scratch']
  %s0 = inlined_call_operand.vmem [shape: bf16[8,32], index: 0, kind: input, shape index: {}]
  %s1 = inlined_call_operand.hbm [shape: bf16[32,300], index: 1, kind: input, shape index: {}]
  %s2 = inlined_call_operand.hbm [shape: f32[8,300], index: 2, kind: output, shape index: {}]
  %s3 = sld [smem:[#allocation0]]
  $region45: #{labeled_matching.1} parent=0
    _
  %s5 = ssub.s32 1, %s3
  %s6 = scalar_select 0, %s5, %s3
  $region1: #{labeled_matching.1} parent=0
    #allocation2 [shape = 'u8[32768]{0}', space=vmem, size = 0x8000, scoped, tag = 'input window, operand 1']
    #allocation3 [shape = 's32[2]{0}', space=sflag, size = 0x8, scoped, tag = 'scoped memory for labeled_matching.1']
    #allocation4 [shape = 's32[2]{0}', space=sflag, size = 0x8, scoped, tag = 'scoped memory for labeled_matching.1']
    #allocation5 [shape = 'u8[16384]{0}', space=vmem, size = 0x4000, scoped, tag = 'output window, operand 0']
    %7 = vsyncpa [#allocation3], 0
    %s8 = scalar_lea.sflag [#allocation3], 1
    %9 = vsyncpa %s8, 0
    %10 = vsyncpa [#allocation4], 0
    %s11 = scalar_lea.sflag [#allocation4], 1
    %12 = vsyncpa %s11, 0
    loop: start=0, step=1, limit=4
    $region2: #{labeled_matching.1} parent=1 // loop_pre_header
      _
    $region3: #{labeled_matching.1} parent=1 // loop_header
      %s14 = sphi 0, %s18
      %p15 = scmp.ge.s32.totalorder %s14, 4
      %s22 = sphi 0, %s22
      %s24 = sphi 0, %s22
      %s25 = sphi 0, %s24
      %s39 = sphi 0, %s25
      %s45 = sphi 0, %s47
      %s48 = sphi 0, %s45
      %s49 = sphi 0, %s48
      %s65 = sphi 0, %s49
      %s71 = sphi 0, %s73
      %s74 = sphi 0, %s71
      %s75 = sphi 0, %s74
      %s91 = sphi 0, %s75
    $region4: #{labeled_matching.1} parent=1 // loop_header_branch
      %17 = sbr.rel (%p15) target = $region8
    $region5: #{labeled_matching.1} parent=1 // loop_body
      %s19 = ssub.s32 %s14, 1
      %s20 = ssub.s32 %s14, 2
      %s21 = sadd.s32 %s14, 1
      %s23 = sadd.s32 %s22, 1
      %p26 = scmp.eq.s32.totalorder %s14, 1
      %p27 = scmp.ne.s32.totalorder %s22, %s24
      %p28 = scmp.eq.s32.totalorder %s14, 0
      %p29 = por %p27, %p28
      %p30 = scmp.ne.s32.totalorder %s22, %s24
      %p31 = scmp.eq.s32.totalorder %s19, 1
      %p32 = por %p30, %p31
      %p33 = scmp.ne.s32.totalorder %s24, %s25
      %p34 = scmp.eq.s32.totalorder %s19, 0
      %p35 = por %p33, %p34
      %p36 = scmp.ne.s32.totalorder %s24, %s25
      %p37 = scmp.eq.s32.totalorder %s20, 1
      %p38 = por %p36, %p37
      %p40 = scmp.ne.s32.totalorder %s25, %s39
      %p41 = scmp.eq.s32.totalorder %s20, 0
      %p42 = por %p40, %p41
      %s43 = ssub.s32 %s14, %s21
      %p44 = scmp.eq.s32.totalorder %s43, 0
      %s46 = sadd.s32 %s45, 1
      %s47 = scalar_select %p44, %s45, %s46
      %p50 = pneg %p44
      %p51 = scmp.eq.s32.totalorder %s14, 1
      %p52 = por %p50, %p51
      %p53 = scmp.ne.s32.totalorder %s45, %s48
      %p54 = scmp.eq.s32.totalorder %s14, 0
      %p55 = por %p53, %p54
      %p56 = scmp.ne.s32.totalorder %s45, %s48
      %p57 = scmp.eq.s32.totalorder %s19, 1
      %p58 = por %p56, %p57
      %p59 = scmp.ne.s32.totalorder %s48, %s49
      %p60 = scmp.eq.s32.totalorder %s19, 0
      %p61 = por %p59, %p60
      %p62 = scmp.ne.s32.totalorder %s48, %s49
      %p63 = scmp.eq.s32.totalorder %s20, 1
      %p64 = por %p62, %p63
      %p66 = scmp.ne.s32.totalorder %s49, %s65
      %p67 = scmp.eq.s32.totalorder %s20, 0
      %p68 = por %p66, %p67
      %s69 = ssub.s32 %s14, %s21
      %p70 = scmp.eq.s32.totalorder %s69, 0
      %s72 = sadd.s32 %s71, 1
      %s73 = scalar_select %p70, %s71, %s72
      %p76 = pneg %p70
      %p77 = scmp.eq.s32.totalorder %s14, 1
      %p78 = por %p76, %p77
      %p79 = scmp.ne.s32.totalorder %s71, %s74
      %p80 = scmp.eq.s32.totalorder %s14, 0
      %p81 = por %p79, %p80
      %p82 = scmp.ne.s32.totalorder %s71, %s74
      %p83 = scmp.eq.s32.totalorder %s19, 1
      %p84 = por %p82, %p83
      %p85 = scmp.ne.s32.totalorder %s74, %s75
      %p86 = scmp.eq.s32.totalorder %s19, 0
      %p87 = por %p85, %p86
      %p88 = scmp.ne.s32.totalorder %s74, %s75
      %p89 = scmp.eq.s32.totalorder %s20, 1
      %p90 = por %p88, %p89
      %p92 = scmp.ne.s32.totalorder %s75, %s91
      %p93 = scmp.eq.s32.totalorder %s20, 0
      %p94 = por %p92, %p93
      %p95 = scmp.le.s32.totalorder 1, %s14
      %p96 = scmp.lt.s32.totalorder %s14, 3
      %p97 = pnand %p95, %p96
      %p98 = pneg %p97
      // Predicated region
      $region9: #{labeled_matching.1} parent=5 // pred_check
        _
      $region10: #{labeled_matching.1} parent=5 // pred_check_branch
        %100 = sbr.rel (%p97) target = $region12
      $region11: #{labeled_matching.1} parent=5 // pred_region
        %s101 = ssub.s32 %s14, 1
        // Predicated region
        $region13: #{labeled_matching.1} parent=11 // pred_check
          %p102 = pneg %p35
        $region14: #{labeled_matching.1} parent=11 // pred_check_branch
          %104 = sbr.rel (%p102) target = $region16
        $region15: #{labeled_matching.1} parent=11 // pred_region
          _
        $region16: #{labeled_matching.1} parent=11 // pred_fallthru
          _
      $region12: #{labeled_matching.1} parent=5 // pred_fallthru
        _
      %p105 = scmp.lt.s32.totalorder %s14, 2
      // Predicated region
      $region17: #{labeled_matching.1} parent=5 // pred_check
        %p106 = pneg %p105
      $region18: #{labeled_matching.1} parent=5 // pred_check_branch
        %108 = sbr.rel (%p106) target = $region20
      $region19: #{labeled_matching.1} parent=5 // pred_region
        // Predicated region
        $region21: #{labeled_matching.1} parent=19 // pred_check
          %p109 = pneg %p55
        $region22: #{labeled_matching.1} parent=19 // pred_check_branch
          %111 = sbr.rel (%p109) target = $region24
        $region23: #{labeled_matching.1} parent=19 // pred_region
          %s112 = sand.u32 %s45, 1
          %s113 = scalar_lea.sflag [#allocation3], %s112
          %s114 = sand.u32 %s45, 1
          %s115 = smul.addr %s114, 32
          %s116 = scalar_lea.vmem [#allocation2], %s115
          %s117 = smul.u32 2, %s14
          %s118 = ssub.s32 3, %s117
          %p119 = scmp.lt.s32.totalorder %s118, 2
          %s120 = scalar_select %p119, %s118, 2
          %s121 = smul.u32 256, %s120
          %s123 = ssub.s32 512, %s121
          %124 = vsyncadd %s113, %s123
          %p125 = scmp.ne.s32.totalorder 0, %s121
          %s126 = smul.addr %s117, 64
          %s127 = scalar_lea.hbm %s1, %s126
          %s128 = smul.u32 %s120, 4
          %s129 = smul.u32 %s128, 4
          %s130 = sshll.u32 %s116, 4
          %s131 = int_to_ptr.vmem [resolvable:$true] %s130
          %s132 = sshll.u32 %s129, 4
          %136 = dma.hbm_to_vmem [thread:$0]  (%p125), %s127, %s132, %s131, %s113, 192, 128, %s128
        $region24: #{labeled_matching.1} parent=19 // pred_fallthru
          _
      $region20: #{labeled_matching.1} parent=5 // pred_fallthru
        _
      %p137 = scmp.le.s32.totalorder 1, %s14
      %p138 = scmp.lt.s32.totalorder %s14, 3
      %p139 = pnand %p137, %p138
      %p140 = pneg %p139
      // Predicated region
      $region25: #{labeled_matching.1} parent=5 // pred_check
        _
      $region26: #{labeled_matching.1} parent=5 // pred_check_branch
        %142 = sbr.rel (%p139) target = $region28
      $region27: #{labeled_matching.1} parent=5 // pred_region
        %s143 = ssub.s32 %s14, 1
        %s144 = sand.u32 %s48, 1
        %s145 = scalar_lea.sflag [#allocation3], %s144
        %s146 = sand.u32 %s48, 1
        %s147 = smul.addr %s146, 32
        %s148 = scalar_lea.vmem [#allocation2], %s147
        // Predicated region
        $region29: #{labeled_matching.1} parent=27 // pred_check
          %p149 = pneg %p61
        $region30: #{labeled_matching.1} parent=27 // pred_check_branch
          %151 = sbr.rel (%p149) target = $region32
        $region31: #{labeled_matching.1} parent=27 // pred_region
          %152 = dma.done %s145, 512
        $region32: #{labeled_matching.1} parent=27 // pred_fallthru
          _
        %p153 = pneg %p35
        %p154 = pneg %p32
        %s155 = sand.u32 %s48, 1
        %s156 = scalar_lea.sflag [#allocation3], %s155
        %s157 = sand.u32 %s48, 1
        %s158 = smul.addr %s157, 32
        %s159 = scalar_lea.vmem [#allocation2], %s158
        %p160 = pneg %p61
        %p161 = pneg %p58
        %p162 = pneg %p87
        %p163 = pneg %p84
        %s164 = sand.u32 %s74, 1
        %s165 = scalar_lea.sflag [#allocation4], %s164
        %s166 = sand.u32 %s74, 1
        %s167 = smul.addr %s166, 16
        %s168 = scalar_lea.vmem [#allocation5], %s167
        %s169 = smul.u32 2, %s19
        %s170 = ssub.s32 3, %s169
        %p171 = scmp.lt.s32.totalorder %s170, 2
        %s172 = scalar_select %p171, %s170, 2
        %s173 = smul.u32 256, %s172
        %s174 = smul.u32 2, %s19
        %s175 = ssub.s32 3, %s174
        %p176 = scmp.lt.s32.totalorder %s175, 2
        %s177 = scalar_select %p176, %s175, 2
        %s178 = smul.u32 128, %s177
        %v180 = vld [vmem:[%s0] sm:$0xf]
        %v181 = vld [vmem:[%s148] sm:$0xff]
        %v182 = vld [vmem:[%s148 + $0x8] sm:$0xff]
        %v183 = vld [vmem:[%s148 + $0x10] sm:$0xff]
        %v184 = vld [vmem:[%s148 + $0x18] sm:$0xff]
        %v189 = vunpack.c.l.b16 %v181
        %v190 = vunpack.c.h.b16 %v181
        %v191 = vunpack.c.l.b16 %v182
        %v192 = vunpack.c.h.b16 %v182
        %v193 = vunpack.c.l.b16 %v183
        %v194 = vunpack.c.h.b16 %v183
        %v195 = vunpack.c.l.b16 %v184
        %v196 = vunpack.c.h.b16 %v184
        %v197 = vpack.c.b16 %v191, %v189
        %v198 = vpack.c.b16 %v192, %v190
        %v199 = vpack.c.b16 %v195, %v193
        %v200 = vpack.c.b16 %v196, %v194
        %vm205 = vcmask 261120
        %v207 = vsel %vm205, %v180, 0
        %209 = vmatprep.subr.bf16.mxu0 %v198
        %210 = vmatpush1.bf16.msra.mxu0 %v197
        %211 = vmatprep.subr.bf16.mxu0 %v200
        %212 = vmatpush1.bf16.msra.mxu0 %v199
        %213 = vmatprep.subr.bf16.mxu0 0
        %214 = vmatpush1.bf16.msra.mxu0 0
        %215 = vmatprep.subr.bf16.mxu0 0
        %216 = vmatpush1.bf16.msra.mxu0 0
        %217 = vmatprep.subr.bf16.mxu0 0
        %218 = vmatpush1.bf16.msra.mxu0 0
        %219 = vmatprep.subr.bf16.mxu0 0
        %220 = vmatpush1.bf16.msra.mxu0 0
        %221 = vmatprep.subr.bf16.mxu0 0
        %222 = vmatpush1.bf16.msra.mxu0 0
        %223 = vmatprep.subr.bf16.mxu0 0
        %224 = vmatpush1.bf16.msra.mxu0 0
        %225 = vmatprep.subr.bf16.mxu0 0
        %226 = vmatpush1.bf16.msra.mxu0 0
        %227 = vmatprep.subr.bf16.mxu0 0
        %228 = vmatpush1.bf16.msra.mxu0 0
        %229 = vmatprep.subr.bf16.mxu0 0
        %230 = vmatpush1.bf16.msra.mxu0 0
        %231 = vmatprep.subr.bf16.mxu0 0
        %232 = vmatpush1.bf16.msra.mxu0 0
        %233 = vmatprep.subr.bf16.mxu0 0
        %234 = vmatpush1.bf16.msra.mxu0 0
        %235 = vmatprep.subr.bf16.mxu0 0
        %236 = vmatpush1.bf16.msra.mxu0 0
        %237 = vmatprep.subr.bf16.mxu0 0
        %238 = vmatpush1.bf16.msra.mxu0 0
        %239 = vmatprep.subr.bf16.mxu0 0
        %240 = vmatpush1.bf16.msra.mxu0 0
        %241 = vmatprep.mubr.bf16.mxu0 0
        %242 = vmatmul.mubr.bf16.gmra.mrb[0].mxu0 %v207
        %v243 = vpop.f32.mrb[0].mxu0
        %v244 = vadd.f32 0.0, %v243
        %v245 = vpop.f32.mrb[0].mxu0
        %v246 = vadd.f32 0.0, %v245
        %v247 = vpop.f32.mrb[0].mxu0
        %v248 = vpop.f32.mrb[0].mxu0
        %249 = vdwg.mxu0
        %250 = vst [vmem:[%s168] sm:$0xff] %v244
        %251 = vst [vmem:[%s168 + $0x8] sm:$0xff] %v246
        %s252 = sand.u32 %s74, 1
        %s253 = scalar_lea.sflag [#allocation4], %s252
        %s254 = sand.u32 %s74, 1
        %s255 = smul.addr %s254, 16
        %s256 = scalar_lea.vmem [#allocation5], %s255
        // Predicated region
        $region33: #{labeled_matching.1} parent=27 // pred_check
          %p257 = pneg %p84
        $region34: #{labeled_matching.1} parent=27 // pred_check_branch
          %259 = sbr.rel (%p257) target = $region36
        $region35: #{labeled_matching.1} parent=27 // pred_region
          %s260 = smul.u32 2, %s19
          %s261 = ssub.s32 3, %s260
          %p262 = scmp.lt.s32.totalorder %s261, 2
          %s263 = scalar_select %p262, %s261, 2
          %s264 = smul.u32 128, %s263
          %s266 = ssub.s32 256, %s264
          %267 = vsyncadd %s253, %s266
          %p268 = scmp.ne.s32.totalorder 0, %s264
          %s269 = smul.addr %s260, 128
          %s270 = scalar_lea.hbm %s2, %s269
          %s271 = smul.u32 %s263, 8
          %s272 = sshll.u32 %s271, 4
          %s273 = sshll.u32 %s256, 4
          %s274 = int_to_ptr.vmem [resolvable:$true] %s273
          %276 = dma.vmem_to_hbm [thread:$0]  (%p268), %s274, %s272, %s270, %s253
        $region36: #{labeled_matching.1} parent=27 // pred_fallthru
          _
      $region28: #{labeled_matching.1} parent=5 // pred_fallthru
        _
      %p277 = scmp.le.s32.totalorder 2, %s14
      // Predicated region
      $region37: #{labeled_matching.1} parent=5 // pred_check
        %p278 = pneg %p277
      $region38: #{labeled_matching.1} parent=5 // pred_check_branch
        %280 = sbr.rel (%p278) target = $region40
      $region39: #{labeled_matching.1} parent=5 // pred_region
        %s281 = ssub.s32 %s14, 2
        // Predicated region
        $region41: #{labeled_matching.1} parent=39 // pred_check
          %p282 = pneg %p90
        $region42: #{labeled_matching.1} parent=39 // pred_check_branch
          %284 = sbr.rel (%p282) target = $region44
        $region43: #{labeled_matching.1} parent=39 // pred_region
          %s285 = sand.u32 %s75, 1
          %s286 = scalar_lea.sflag [#allocation4], %s285
          %s287 = sand.u32 %s75, 1
          %s288 = smul.addr %s287, 16
          %s289 = scalar_lea.vmem [#allocation5], %s288
          %290 = dma.done %s286, 256
        $region44: #{labeled_matching.1} parent=39 // pred_fallthru
          _
      $region40: #{labeled_matching.1} parent=5 // pred_fallthru
        _
    $region6: #{labeled_matching.1} parent=1 // loop_footer
      %s18 = sadd.s32 1, %s14
    $region7: #{labeled_matching.1} parent=1 // loop_footer_branch
      %13 = sbr.rel target = $region3
    $region8: #{labeled_matching.1} parent=1 // loop_exit
      _
    %291 = vsyncpa [#allocation3], 1
    %s292 = scalar_lea.sflag [#allocation3], 1
    %293 = vsyncpa %s292, 1
    %294 = vsyncpa [#allocation4], 1
    %s295 = scalar_lea.sflag [#allocation4], 1
    %296 = vsyncpa %s295, 1

</llo_original>
